<compile_context>
chip_gen: v7x
topology: tpu7x:2x2x1
jax: 0.10.0
libtpu: 0.0.40
codegen_flags: <defaults>
</compile_context>

<pallas_src>
import jax
import jax.numpy as jnp
from jax.experimental import pallas as pl
from jax.experimental.pallas import tpu as pltpu

BN_EPS = 1e-5
TB_MAX = 512  # batch-tile rows for large batches (multiple of 128)


def churnnet_kernel(x_ref, w1_ref, b1_ref, w2_ref, b2_ref, w3_ref, b3_ref,
                    w4_ref, b4_ref, o_ref):
    """One (TB, input_size) batch tile -> (TB, 1) sigmoid probabilities."""

    def hidden(h_bf16, w_ref, b_ref):
        # Linear (BN pre-folded into w/b) + ReLU.  bf16 operands, f32 accumulate.
        z = jnp.dot(h_bf16, w_ref[...], preferred_element_type=jnp.float32)
        return jnp.maximum(z + b_ref[...], 0.0)

    h = hidden(x_ref[...], w1_ref, b1_ref)                 # (TB, 128) f32
    h = hidden(h.astype(jnp.bfloat16), w2_ref, b2_ref)     # (TB, 64)  f32
    h = hidden(h.astype(jnp.bfloat16), w3_ref, b3_ref)     # (TB, 32)  f32

    # Output Linear(32 -> 1): broadcast-mul + lane reduce on the VPU/XLU
    # instead of an N=1 MXU matmul.
    logits = jnp.sum(h * w4_ref[...], axis=-1, keepdims=True) + b4_ref[...]
    o_ref[...] = jax.nn.sigmoid(logits)


def fold_params(params):
    """One-time constant fold: BN(eval) into the preceding Linear; cast matmul
    weights to bf16.  Returns the 9 arrays the kernel consumes."""
    (w1, b1, g1, be1, m1, v1,
     w2, b2, g2, be2, m2, v2,
     w3, b3, g3, be3, m3, v3,
     w4, b4) = params

    def fold(w, b, g, be, m, v):
        scale = g * jax.lax.rsqrt(v + BN_EPS)            # (1, F)
        w_f = (w * scale).astype(jnp.bfloat16)           # (in, F)
        b_f = ((b - m) * scale + be).astype(jnp.float32)  # (1, F)
        return w_f, b_f

    fw1, fb1 = fold(w1, b1, g1, be1, m1, v1)
    fw2, fb2 = fold(w2, b2, g2, be2, m2, v2)
    fw3, fb3 = fold(w3, b3, g3, be3, m3, v3)
    # Output layer stays f32; pass w4 as a (1, 32) row for the VPU reduce path.
    return [fw1, fb1, fw2, fb2, fw3, fb3,
            jnp.transpose(w4).astype(jnp.float32), b4.astype(jnp.float32)]


def churnnet_forward(x, folded_params):
    """Batch-tiled Pallas call; weights resident, batch axis parallel."""
    batch, feat = x.shape
    if batch <= TB_MAX:
        tb = 8 * pl.cdiv(batch, 8)      # single grid step, sublane-aligned
    else:
        tb = TB_MAX                     # fills the MXU rows, amortizes overhead
    b_pad = tb * pl.cdiv(batch, tb)
    if b_pad != batch:
        x = jnp.pad(x, ((0, b_pad - batch), (0, 0)))
    x_bf16 = x.astype(jnp.bfloat16)     # halve activation HBM traffic

    def resident(arr):
        # Whole array as one block; constant index_map -> DMA'd once, reused.
        return pl.BlockSpec(arr.shape, lambda i, _nd=arr.ndim: (0,) * _nd)

    out = pl.pallas_call(
        churnnet_kernel,
        out_shape=jax.ShapeDtypeStruct((b_pad, 1), jnp.float32),
        grid=(b_pad // tb,),
        in_specs=[pl.BlockSpec((tb, feat), lambda i: (i, 0))]
                 + [resident(p) for p in folded_params],
        out_specs=pl.BlockSpec((tb, 1), lambda i: (i, 0)),
        compiler_params=pltpu.CompilerParams(
            dimension_semantics=("parallel",)),
    )(x_bf16, *folded_params)
    return out[:batch]


def init_params(key, input_size):
    """Deterministic params mimicking nn.Linear default init and BatchNorm1d
    (gamma=1, beta=0) with synthetic running stats."""
    dims = [(input_size, 128), (128, 64), (64, 32), (32, 1)]
    params = []
    for li, (fan_in, fan_out) in enumerate(dims):
        key, kw, kb, km, kv = jax.random.split(key, 5)
        bound = 1.0 / jnp.sqrt(jnp.float32(fan_in))
        # stored as (in, out) — transpose of PyTorch's (out, in)
        w = jax.random.uniform(kw, (fan_in, fan_out), jnp.float32, -bound, bound)
        b = jax.random.uniform(kb, (1, fan_out), jnp.float32, -bound, bound)
        params.extend([w, b])
        if li < 3:  # hidden layers have BatchNorm1d
            gamma = jnp.ones((1, fan_out), jnp.float32)
            beta = jnp.zeros((1, fan_out), jnp.float32)
            run_mean = 0.1 * jax.random.normal(km, (1, fan_out), jnp.float32)
            run_var = 1.0 + 0.05 * jax.random.uniform(kv, (1, fan_out), jnp.float32)
            params.extend([gamma, beta, run_mean, run_var])
    return params


def churnnet_reference(x, params):
    """Pure-JAX f32 reference (unfolded BN, full precision)."""
    (w1, b1, g1, be1, m1, v1,
     w2, b2, g2, be2, m2, v2,
     w3, b3, g3, be3, m3, v3,
     w4, b4) = params

    def block(h, w, b, g, be, m, v):
        z = h @ w + b
        z = (z - m) * jax.lax.rsqrt(v + BN_EPS) * g + be
        return jnp.maximum(z, 0.0)

    h = block(x, w1, b1, g1, be1, m1, v1)
    h = block(h, w2, b2, g2, be2, m2, v2)
    h = block(h, w3, b3, g3, be3, m3, v3)
    return jax.nn.sigmoid(h @ w4 + b4)


if __name__ == "__main__":
    key = jax.random.PRNGKey(0)
    key, kx, kp = jax.random.split(key, 3)

    batch = 8
    input_size = 32  # feature count for the churn model

    x = jax.random.normal(kx, (batch, input_size), jnp.float32)
    params = init_params(kp, input_size)
    folded = fold_params(params)   # one-time BN fold + bf16 weight cast

    out = churnnet_forward(x, folded)
    out = jax.block_until_ready(out)

    ref = churnnet_reference(x, params)
    assert out.shape == (batch, 1)
    assert bool(jnp.all(jnp.isfinite(out)))
    # bf16 matmul operands (f32 accumulate) -> small drift vs f32 reference.
    assert bool(jnp.allclose(out, ref, rtol=5e-2, atol=2e-2)), "mismatch vs reference"

    print("KERNEL_OK")
</pallas_src>

<mosaic_0001>
module attributes {stable_mosaic.version = 11 : i64} {
  func.func @churnnet_kernel(%arg0: i32, %arg1: memref<8x32xbf16, #tpu.memory_space<vmem>>, %arg2: memref<32x128xbf16, #tpu.memory_space<vmem>>, %arg3: memref<1x128xf32, #tpu.memory_space<vmem>>, %arg4: memref<128x64xbf16, #tpu.memory_space<vmem>>, %arg5: memref<1x64xf32, #tpu.memory_space<vmem>>, %arg6: memref<64x32xbf16, #tpu.memory_space<vmem>>, %arg7: memref<1x32xf32, #tpu.memory_space<vmem>>, %arg8: memref<1x32xf32, #tpu.memory_space<vmem>>, %arg9: memref<1x1xf32, #tpu.memory_space<vmem>>, %arg10: memref<8x1xf32, #tpu.memory_space<vmem>>) attributes {dimension_semantics = [#tpu.dimension_semantics<parallel>], iteration_bounds = array<i64: 1>, scalar_prefetch = 0 : i64, scratch_operands = 0 : i64, tpu.core_type = #tpu.core_type<tc>, window_params = [{transform_indices = @transform_0, window_bounds = array<i64: 8, 32>}, {pipeline_mode = #tpu.pipeline_mode<synchronous>, transform_indices = @transform_1, window_bounds = array<i64: 32, 128>}, {pipeline_mode = #tpu.pipeline_mode<synchronous>, transform_indices = @transform_2, window_bounds = array<i64: 1, 128>}, {pipeline_mode = #tpu.pipeline_mode<synchronous>, transform_indices = @transform_3, window_bounds = array<i64: 128, 64>}, {pipeline_mode = #tpu.pipeline_mode<synchronous>, transform_indices = @transform_4, window_bounds = array<i64: 1, 64>}, {pipeline_mode = #tpu.pipeline_mode<synchronous>, transform_indices = @transform_5, window_bounds = array<i64: 64, 32>}, {pipeline_mode = #tpu.pipeline_mode<synchronous>, transform_indices = @transform_6, window_bounds = array<i64: 1, 32>}, {pipeline_mode = #tpu.pipeline_mode<synchronous>, transform_indices = @transform_7, window_bounds = array<i64: 1, 32>}, {pipeline_mode = #tpu.pipeline_mode<synchronous>, transform_indices = @transform_8, window_bounds = array<i64: 1, 1>}, {transform_indices = @transform_9, window_bounds = array<i64: 8, 1>}]} {
    %c0 = arith.constant 0 : index
    %c0_0 = arith.constant 0 : index
    %0 = vector.load %arg1[%c0, %c0_0] : memref<8x32xbf16, #tpu.memory_space<vmem>>, vector<8x32xbf16>
    %c0_1 = arith.constant 0 : index
    %c0_2 = arith.constant 0 : index
    %1 = vector.load %arg2[%c0_1, %c0_2] : memref<32x128xbf16, #tpu.memory_space<vmem>>, vector<32x128xbf16>
    %cst = arith.constant dense<0.000000e+00> : vector<8x128xf32>
    %2 = tpu.matmul %0, %1, %cst {dimension_numbers = #tpu.dot_dimension_numbers<[1], [0], [0], [1], [0, 0, 1, 1], [], []>} : vector<8x32xbf16>, vector<32x128xbf16>, vector<8x128xf32> -> vector<8x128xf32>
    %c0_3 = arith.constant 0 : index
    %c0_4 = arith.constant 0 : index
    %3 = vector.load %arg3[%c0_3, %c0_4] : memref<1x128xf32, #tpu.memory_space<vmem>>, vector<1x128xf32>
    %4 = vector.broadcast %3 : vector<1x128xf32> to vector<8x128xf32>
    %5 = arith.addf %2, %4 : vector<8x128xf32>
    %cst_5 = arith.constant 0.000000e+00 : f32
    %6 = vector.broadcast %cst_5 : f32 to vector<8x128xf32>
    %7 = arith.maximumf %5, %6 : vector<8x128xf32>
    %8 = arith.truncf %7 : vector<8x128xf32> to vector<8x128xbf16>
    %c0_6 = arith.constant 0 : index
    %c0_7 = arith.constant 0 : index
    %9 = vector.load %arg4[%c0_6, %c0_7] : memref<128x64xbf16, #tpu.memory_space<vmem>>, vector<128x64xbf16>
    %cst_8 = arith.constant dense<0.000000e+00> : vector<8x64xf32>
    %10 = tpu.matmul %8, %9, %cst_8 {dimension_numbers = #tpu.dot_dimension_numbers<[1], [0], [0], [1], [0, 0, 1, 1], [], []>} : vector<8x128xbf16>, vector<128x64xbf16>, vector<8x64xf32> -> vector<8x64xf32>
    %c0_9 = arith.constant 0 : index
    %c0_10 = arith.constant 0 : index
    %11 = vector.load %arg5[%c0_9, %c0_10] : memref<1x64xf32, #tpu.memory_space<vmem>>, vector<1x64xf32>
    %12 = vector.broadcast %11 : vector<1x64xf32> to vector<8x64xf32>
    %13 = arith.addf %10, %12 : vector<8x64xf32>
    %cst_11 = arith.constant 0.000000e+00 : f32
    %14 = vector.broadcast %cst_11 : f32 to vector<8x64xf32>
    %15 = arith.maximumf %13, %14 : vector<8x64xf32>
    %16 = arith.truncf %15 : vector<8x64xf32> to vector<8x64xbf16>
    %c0_12 = arith.constant 0 : index
    %c0_13 = arith.constant 0 : index
    %17 = vector.load %arg6[%c0_12, %c0_13] : memref<64x32xbf16, #tpu.memory_space<vmem>>, vector<64x32xbf16>
    %cst_14 = arith.constant dense<0.000000e+00> : vector<8x32xf32>
    %18 = tpu.matmul %16, %17, %cst_14 {dimension_numbers = #tpu.dot_dimension_numbers<[1], [0], [0], [1], [0, 0, 1, 1], [], []>} : vector<8x64xbf16>, vector<64x32xbf16>, vector<8x32xf32> -> vector<8x32xf32>
    %c0_15 = arith.constant 0 : index
    %c0_16 = arith.constant 0 : index
    %19 = vector.load %arg7[%c0_15, %c0_16] : memref<1x32xf32, #tpu.memory_space<vmem>>, vector<1x32xf32>
    %20 = vector.broadcast %19 : vector<1x32xf32> to vector<8x32xf32>
    %21 = arith.addf %18, %20 : vector<8x32xf32>
    %cst_17 = arith.constant 0.000000e+00 : f32
    %22 = vector.broadcast %cst_17 : f32 to vector<8x32xf32>
    %23 = arith.maximumf %21, %22 : vector<8x32xf32>
    %c0_18 = arith.constant 0 : index
    %c0_19 = arith.constant 0 : index
    %24 = vector.load %arg8[%c0_18, %c0_19] : memref<1x32xf32, #tpu.memory_space<vmem>>, vector<1x32xf32>
    %25 = vector.broadcast %24 : vector<1x32xf32> to vector<8x32xf32>
    %26 = arith.mulf %23, %25 : vector<8x32xf32>
    %cst_20 = arith.constant dense<0.000000e+00> : vector<8xf32>
    %27 = vector.multi_reduction <add>, %26, %cst_20 [1] : vector<8x32xf32> to vector<8xf32>
    %28 = vector.shape_cast %27 : vector<8xf32> to vector<8x1xf32>
    %c0_21 = arith.constant 0 : index
    %c0_22 = arith.constant 0 : index
    %29 = vector.load %arg9[%c0_21, %c0_22] : memref<1x1xf32, #tpu.memory_space<vmem>>, vector<1x1xf32>
    %30 = vector.broadcast %29 : vector<1x1xf32> to vector<8x1xf32>
    %31 = arith.addf %28, %30 : vector<8x1xf32>
    %32 = arith.negf %31 : vector<8x1xf32>
    %33 = math.exp %32 : vector<8x1xf32>
    %cst_23 = arith.constant 1.000000e+00 : f32
    %34 = vector.broadcast %cst_23 : f32 to vector<8x1xf32>
    %35 = arith.addf %34, %33 : vector<8x1xf32>
    %36 = arith.divf %34, %35 : vector<8x1xf32>
    %c0_24 = arith.constant 0 : index
    %c0_25 = arith.constant 0 : index
    %37 = vector.load %arg10[%c0_24, %c0_25] : memref<8x1xf32, #tpu.memory_space<vmem>>, vector<8x1xf32>
    tpu.vector_store %arg10[%c0_24, %c0_25], %36 {strides = array<i32>} : memref<8x1xf32, #tpu.memory_space<vmem>>, vector<8x1xf32>,
    return
  }
  func.func @transform_0(%arg0: i32) -> (i32, i32) {
    %c0_i32 = arith.constant 0 : i32
    %c0_i32_0 = arith.constant 0 : i32
    return %arg0, %c0_i32 : i32, i32
  }
  func.func @transform_1(%arg0: i32) -> (i32, i32) {
    %c0_i32 = arith.constant 0 : i32
    %c0_i32_0 = arith.constant 0 : i32
    %c0_i32_1 = arith.constant 0 : i32
    return %c0_i32, %c0_i32_0 : i32, i32
  }
  func.func @transform_2(%arg0: i32) -> (i32, i32) {
    %c0_i32 = arith.constant 0 : i32
    %c0_i32_0 = arith.constant 0 : i32
    %c0_i32_1 = arith.constant 0 : i32
    return %c0_i32, %c0_i32_0 : i32, i32
  }
  func.func @transform_3(%arg0: i32) -> (i32, i32) {
    %c0_i32 = arith.constant 0 : i32
    %c0_i32_0 = arith.constant 0 : i32
    %c0_i32_1 = arith.constant 0 : i32
    return %c0_i32, %c0_i32_0 : i32, i32
  }
  func.func @transform_4(%arg0: i32) -> (i32, i32) {
    %c0_i32 = arith.constant 0 : i32
    %c0_i32_0 = arith.constant 0 : i32
    %c0_i32_1 = arith.constant 0 : i32
    return %c0_i32, %c0_i32_0 : i32, i32
  }
  func.func @transform_5(%arg0: i32) -> (i32, i32) {
    %c0_i32 = arith.constant 0 : i32
    %c0_i32_0 = arith.constant 0 : i32
    %c0_i32_1 = arith.constant 0 : i32
    return %c0_i32, %c0_i32_0 : i32, i32
  }
  func.func @transform_6(%arg0: i32) -> (i32, i32) {
    %c0_i32 = arith.constant 0 : i32
    %c0_i32_0 = arith.constant 0 : i32
    %c0_i32_1 = arith.constant 0 : i32
    return %c0_i32, %c0_i32_0 : i32, i32
  }
  func.func @transform_7(%arg0: i32) -> (i32, i32) {
    %c0_i32 = arith.constant 0 : i32
    %c0_i32_0 = arith.constant 0 : i32
    %c0_i32_1 = arith.constant 0 : i32
    return %c0_i32, %c0_i32_0 : i32, i32
  }
  func.func @transform_8(%arg0: i32) -> (i32, i32) {
    %c0_i32 = arith.constant 0 : i32
    %c0_i32_0 = arith.constant 0 : i32
    %c0_i32_1 = arith.constant 0 : i32
    return %c0_i32, %c0_i32_0 : i32, i32
  }
  func.func @transform_9(%arg0: i32) -> (i32, i32) {
    %c0_i32 = arith.constant 0 : i32
    %c0_i32_0 = arith.constant 0 : i32
    return %arg0, %c0_i32 : i32, i32
  }
}

</mosaic_0001>

<llo_original>
// kernel: tpu_custom_call.1
$region0: #{tpu_custom_call.1}
  #allocation0 [shape = 'u32[]', space=smem, size = 0x4, offset = 0x4, fixed_abs, tag = 'smem constant byte address 0x4 - core index']
  #allocation1 [shape = 'u32[144,128]{1,0:T(1,128)}', space=vmem, size = 0x12000, scoped, tag = 'internal scratch']
  #allocation2 [shape = 'f32[1,1]{1,0:T(1,128)S(1)}', space=vmem, size = 0x200, scoped, tag = 'scoped memory for tpu_custom_call.1']
  %s0 = inlined_call_operand.vmem [shape: bf16[8,32], index: 0, kind: input, shape index: {}]
  %s1 = inlined_call_operand.vmem [shape: bf16[32,128], index: 1, kind: input, shape index: {}]
  %s2 = inlined_call_operand.vmem [shape: f32[1,128], index: 2, kind: input, shape index: {}]
  %s3 = inlined_call_operand.vmem [shape: bf16[128,64], index: 3, kind: input, shape index: {}]
  %s4 = inlined_call_operand.vmem [shape: f32[1,64], index: 4, kind: input, shape index: {}]
  %s5 = inlined_call_operand.vmem [shape: bf16[64,32], index: 5, kind: input, shape index: {}]
  %s6 = inlined_call_operand.vmem [shape: f32[1,32], index: 6, kind: input, shape index: {}]
  %s7 = inlined_call_operand.vmem [shape: f32[1,32], index: 7, kind: input, shape index: {}]
  %s8 = inlined_call_operand.<no memory space> [shape: f32[1,1], index: 8, kind: input, shape index: {}]
  %s9 = inlined_call_operand.vmem [shape: f32[8,1], index: 9, kind: output, shape index: {}]
  %s10 = sld [smem:[#allocation0]]
  $region46: #{tpu_custom_call.1} parent=0
    _
  %s12 = ssub.s32 1, %s10
  %s13 = scalar_select 0, %s12, %s10
  %v14 = vstv %s8
  %15 = vst [vmem:[#allocation2] sm:$0x1] %v14
  // Predicated region
  $region2: #{tpu_custom_call.1} parent=0 // pred_check
    _
  $region3: #{tpu_custom_call.1} parent=0 // pred_check_branch
    %17 = sbr.rel (0) target = $region5
  $region4: #{tpu_custom_call.1} parent=0 // pred_region
    _
  $region5: #{tpu_custom_call.1} parent=0 // pred_fallthru
    _
  // Predicated region
  $region6: #{tpu_custom_call.1} parent=0 // pred_check
    _
  $region7: #{tpu_custom_call.1} parent=0 // pred_check_branch
    %19 = sbr.rel (0) target = $region9
  $region8: #{tpu_custom_call.1} parent=0 // pred_region
    _
  $region9: #{tpu_custom_call.1} parent=0 // pred_fallthru
    _
  // Predicated region
  $region10: #{tpu_custom_call.1} parent=0 // pred_check
    _
  $region11: #{tpu_custom_call.1} parent=0 // pred_check_branch
    %21 = sbr.rel (0) target = $region13
  $region12: #{tpu_custom_call.1} parent=0 // pred_region
    _
  $region13: #{tpu_custom_call.1} parent=0 // pred_fallthru
    _
  // Predicated region
  $region14: #{tpu_custom_call.1} parent=0 // pred_check
    _
  $region15: #{tpu_custom_call.1} parent=0 // pred_check_branch
    %23 = sbr.rel (0) target = $region17
  $region16: #{tpu_custom_call.1} parent=0 // pred_region
    _
  $region17: #{tpu_custom_call.1} parent=0 // pred_fallthru
    _
  // Predicated region
  $region18: #{tpu_custom_call.1} parent=0 // pred_check
    _
  $region19: #{tpu_custom_call.1} parent=0 // pred_check_branch
    %25 = sbr.rel (0) target = $region21
  $region20: #{tpu_custom_call.1} parent=0 // pred_region
    _
  $region21: #{tpu_custom_call.1} parent=0 // pred_fallthru
    _
  // Predicated region
  $region22: #{tpu_custom_call.1} parent=0 // pred_check
    _
  $region23: #{tpu_custom_call.1} parent=0 // pred_check_branch
    %27 = sbr.rel (0) target = $region25
  $region24: #{tpu_custom_call.1} parent=0 // pred_region
    _
  $region25: #{tpu_custom_call.1} parent=0 // pred_fallthru
    _
  // Predicated region
  $region26: #{tpu_custom_call.1} parent=0 // pred_check
    _
  $region27: #{tpu_custom_call.1} parent=0 // pred_check_branch
    %29 = sbr.rel (0) target = $region29
  $region28: #{tpu_custom_call.1} parent=0 // pred_region
    _
  $region29: #{tpu_custom_call.1} parent=0 // pred_fallthru
    _
  // Predicated region
  $region30: #{tpu_custom_call.1} parent=0 // pred_check
    _
  $region31: #{tpu_custom_call.1} parent=0 // pred_check_branch
    %31 = sbr.rel (0) target = $region33
  $region32: #{tpu_custom_call.1} parent=0 // pred_region
    _
  $region33: #{tpu_custom_call.1} parent=0 // pred_fallthru
    _
  // Predicated region
  $region34: #{tpu_custom_call.1} parent=0 // pred_check
    _
  $region35: #{tpu_custom_call.1} parent=0 // pred_check_branch
    %33 = sbr.rel (0) target = $region37
  $region36: #{tpu_custom_call.1} parent=0 // pred_region
    _
  $region37: #{tpu_custom_call.1} parent=0 // pred_fallthru
    _
  %v35 = vld [vmem:[%s0] sm:$0xf]
  %v36 = vld [vmem:[%s1] sm:$0xf]
  %v37 = vld [vmem:[%s1 + $0x4] sm:$0xf]
  %v38 = vld [vmem:[%s1 + $0x8] sm:$0xf]
  %v39 = vld [vmem:[%s1 + $0xc] sm:$0xf]
  %v40 = vld [vmem:[%s2] sm:$0x1]
  %v42 = vlaneseq
  %v43 = vshrl.u32 %v42, 7
  %v44 = vsub.s32 0, %v43
  %v45 = vrot.slane %v40, %v44
  %v51 = vunpack.c.l.b16 %v36
  %v52 = vunpack.c.l.b16 %v37
  %v53 = vunpack.c.l.b16 %v38
  %v54 = vunpack.c.l.b16 %v39
  %v55 = vpack.c.b16 %v52, %v51
  %v56 = vpack.c.b16 %v54, %v53
  %vm59 = vcmask 261120
  %v61 = vsel %vm59, %v35, 0
  %63 = vmatprep.subr.bf16.mxu0 0
  %64 = vmatpush1.bf16.msra.mxu0 %v55
  %65 = vmatprep.subr.bf16.mxu0 0
  %66 = vmatpush1.bf16.msra.mxu0 %v56
  %67 = vmatprep.subr.bf16.mxu0 0
  %68 = vmatpush1.bf16.msra.mxu0 0
  %69 = vmatprep.subr.bf16.mxu0 0
  %70 = vmatpush1.bf16.msra.mxu0 0
  %71 = vmatprep.subr.bf16.mxu0 0
  %72 = vmatpush1.bf16.msra.mxu0 0
  %73 = vmatprep.subr.bf16.mxu0 0
  %74 = vmatpush1.bf16.msra.mxu0 0
  %75 = vmatprep.subr.bf16.mxu0 0
  %76 = vmatpush1.bf16.msra.mxu0 0
  %77 = vmatprep.subr.bf16.mxu0 0
  %78 = vmatpush1.bf16.msra.mxu0 0
  %79 = vmatprep.subr.bf16.mxu0 0
  %80 = vmatpush1.bf16.msra.mxu0 0
  %81 = vmatprep.subr.bf16.mxu0 0
  %82 = vmatpush1.bf16.msra.mxu0 0
  %83 = vmatprep.subr.bf16.mxu0 0
  %84 = vmatpush1.bf16.msra.mxu0 0
  %85 = vmatprep.subr.bf16.mxu0 0
  %86 = vmatpush1.bf16.msra.mxu0 0
  %87 = vmatprep.subr.bf16.mxu0 0
  %88 = vmatpush1.bf16.msra.mxu0 0
  %89 = vmatprep.subr.bf16.mxu0 0
  %90 = vmatpush1.bf16.msra.mxu0 0
  %91 = vmatprep.subr.bf16.mxu0 0
  %92 = vmatpush1.bf16.msra.mxu0 0
  %93 = vmatprep.subr.bf16.mxu0 0
  %94 = vmatpush1.bf16.msra.mxu0 0
  %95 = vmatprep.mubr.bf16.mxu0 0
  %96 = vmatmul.mubr.bf16.gmra.mrb[0].mxu0 %v61
  %v97 = vpop.f32.mrb[0].mxu0
  %v98 = vadd.f32 %v45, %v97
  %v99 = vpop.f32.mrb[0].mxu0
  %v100 = vpop.f32.mrb[0].mxu0
  %v101 = vpop.f32.mrb[0].mxu0
  %102 = vdwg.mxu0
  %v103 = vmax.f32 %v98, 0.0
  %v104 = vpack.c.bf16 %v103, %v103
  %v105 = vld [vmem:[%s3] sm:$0xf]
  %v106 = vld [vmem:[%s3 + $0x4] sm:$0xf]
  %v107 = vld [vmem:[%s3 + $0x8] sm:$0xf]
  %v108 = vld [vmem:[%s3 + $0xc] sm:$0xf]
  %v109 = vld [vmem:[%s3 + $0x10] sm:$0xf]
  %v110 = vld [vmem:[%s3 + $0x14] sm:$0xf]
  %v111 = vld [vmem:[%s3 + $0x18] sm:$0xf]
  %v112 = vld [vmem:[%s3 + $0x1c] sm:$0xf]
  %v113 = vld [vmem:[%s3 + $0x20] sm:$0xf]
  %v114 = vld [vmem:[%s3 + $0x24] sm:$0xf]
  %v115 = vld [vmem:[%s3 + $0x28] sm:$0xf]
  %v116 = vld [vmem:[%s3 + $0x2c] sm:$0xf]
  %v117 = vld [vmem:[%s3 + $0x30] sm:$0xf]
  %v118 = vld [vmem:[%s3 + $0x34] sm:$0xf]
  %v119 = vld [vmem:[%s3 + $0x38] sm:$0xf]
  %v120 = vld [vmem:[%s3 + $0x3c] sm:$0xf]
  %v121 = vld [vmem:[%s4] sm:$0x1]
  %v123 = vlaneseq
  %v124 = vshrl.u32 %v123, 7
  %v125 = vsub.s32 0, %v124
  %v126 = vrot.slane %v121, %v125
  %v144 = vunpack.c.l.b16 %v105
  %v145 = vunpack.c.l.b16 %v106
  %v146 = vunpack.c.l.b16 %v107
  %v147 = vunpack.c.l.b16 %v108
  %v148 = vunpack.c.l.b16 %v109
  %v149 = vunpack.c.l.b16 %v110
  %v150 = vunpack.c.l.b16 %v111
  %v151 = vunpack.c.l.b16 %v112
  %v152 = vunpack.c.l.b16 %v113
  %v153 = vunpack.c.l.b16 %v114
  %v154 = vunpack.c.l.b16 %v115
  %v155 = vunpack.c.l.b16 %v116
  %v156 = vunpack.c.l.b16 %v117
  %v157 = vunpack.c.l.b16 %v118
  %v158 = vunpack.c.l.b16 %v119
  %v159 = vunpack.c.l.b16 %v120
  %v160 = vpack.c.b16 %v145, %v144
  %v161 = vpack.c.b16 %v147, %v146
  %v162 = vpack.c.b16 %v149, %v148
  %v163 = vpack.c.b16 %v151, %v150
  %v164 = vpack.c.b16 %v153, %v152
  %v165 = vpack.c.b16 %v155, %v154
  %v166 = vpack.c.b16 %v157, %v156
  %v167 = vpack.c.b16 %v159, %v158
  %176 = vmatprep.subr.bf16.mxu0 0
  %177 = vmatpush1.bf16.msra.mxu0 %v160
  %178 = vmatprep.subr.bf16.mxu0 0
  %179 = vmatpush1.bf16.msra.mxu0 %v161
  %180 = vmatprep.subr.bf16.mxu0 0
  %181 = vmatpush1.bf16.msra.mxu0 %v162
  %182 = vmatprep.subr.bf16.mxu0 0
  %183 = vmatpush1.bf16.msra.mxu0 %v163
  %184 = vmatprep.subr.bf16.mxu0 0
  %185 = vmatpush1.bf16.msra.mxu0 %v164
  %186 = vmatprep.subr.bf16.mxu0 0
  %187 = vmatpush1.bf16.msra.mxu0 %v165
  %188 = vmatprep.subr.bf16.mxu0 0
  %189 = vmatpush1.bf16.msra.mxu0 %v166
  %190 = vmatprep.subr.bf16.mxu0 0
  %191 = vmatpush1.bf16.msra.mxu0 %v167
  %192 = vmatprep.subr.bf16.mxu0 0
  %193 = vmatpush1.bf16.msra.mxu0 0
  %194 = vmatprep.subr.bf16.mxu0 0
  %195 = vmatpush1.bf16.msra.mxu0 0
  %196 = vmatprep.subr.bf16.mxu0 0
  %197 = vmatpush1.bf16.msra.mxu0 0
  %198 = vmatprep.subr.bf16.mxu0 0
  %199 = vmatpush1.bf16.msra.mxu0 0
  %200 = vmatprep.subr.bf16.mxu0 0
  %201 = vmatpush1.bf16.msra.mxu0 0
  %202 = vmatprep.subr.bf16.mxu0 0
  %203 = vmatpush1.bf16.msra.mxu0 0
  %204 = vmatprep.subr.bf16.mxu0 0
  %205 = vmatpush1.bf16.msra.mxu0 0
  %206 = vmatprep.subr.bf16.mxu0 0
  %207 = vmatpush1.bf16.msra.mxu0 0
  %208 = vmatprep.mubr.bf16.mxu0 0
  %209 = vmatmul.mubr.bf16.gmra.mrb[0].mxu0 %v104
  %v210 = vpop.f32.mrb[0].mxu0
  %v211 = vadd.f32 %v126, %v210
  %v212 = vpop.f32.mrb[0].mxu0
  %v213 = vpop.f32.mrb[0].mxu0
  %v214 = vpop.f32.mrb[0].mxu0
  %215 = vdwg.mxu0
  %v216 = vmax.f32 %v211, 0.0
  %v217 = vpack.c.bf16 %v216, %v216
  %v218 = vld [vmem:[%s5] sm:$0xf]
  %v219 = vld [vmem:[%s5 + $0x4] sm:$0xf]
  %v220 = vld [vmem:[%s5 + $0x8] sm:$0xf]
  %v221 = vld [vmem:[%s5 + $0xc] sm:$0xf]
  %v222 = vld [vmem:[%s5 + $0x10] sm:$0xf]
  %v223 = vld [vmem:[%s5 + $0x14] sm:$0xf]
  %v224 = vld [vmem:[%s5 + $0x18] sm:$0xf]
  %v225 = vld [vmem:[%s5 + $0x1c] sm:$0xf]
  %v226 = vld [vmem:[%s6] sm:$0x1]
  %v228 = vlaneseq
  %v229 = vshrl.u32 %v228, 7
  %v230 = vsub.s32 0, %v229
  %v231 = vrot.slane %v226, %v230
  %v241 = vunpack.c.l.b16 %v218
  %v242 = vunpack.c.l.b16 %v219
  %v243 = vunpack.c.l.b16 %v220
  %v244 = vunpack.c.l.b16 %v221
  %v245 = vunpack.c.l.b16 %v222
  %v246 = vunpack.c.l.b16 %v223
  %v247 = vunpack.c.l.b16 %v224
  %v248 = vunpack.c.l.b16 %v225
  %v249 = vpack.c.b16 %v242, %v241
  %v250 = vpack.c.b16 %v244, %v243
  %v251 = vpack.c.b16 %v246, %v245
  %v252 = vpack.c.b16 %v248, %v247
  %vm257 = vcmask 523264
  %v259 = vsel %vm257, %v217, 0
  %261 = vmatprep.subr.bf16.mxu0 0
  %262 = vmatpush1.bf16.msra.mxu0 %v249
  %263 = vmatprep.subr.bf16.mxu0 0
  %264 = vmatpush1.bf16.msra.mxu0 %v250
  %265 = vmatprep.subr.bf16.mxu0 0
  %266 = vmatpush1.bf16.msra.mxu0 %v251
  %267 = vmatprep.subr.bf16.mxu0 0
  %268 = vmatpush1.bf16.msra.mxu0 %v252
  %269 = vmatprep.subr.bf16.mxu0 0
  %270 = vmatpush1.bf16.msra.mxu0 0
  %271 = vmatprep.subr.bf16.mxu0 0
  %272 = vmatpush1.bf16.msra.mxu0 0
  %273 = vmatprep.subr.bf16.mxu0 0
  %274 = vmatpush1.bf16.msra.mxu0 0
  %275 = vmatprep.subr.bf16.mxu0 0
  %276 = vmatpush1.bf16.msra.mxu0 0
  %277 = vmatprep.subr.bf16.mxu0 0
  %278 = vmatpush1.bf16.msra.mxu0 0
  %279 = vmatprep.subr.bf16.mxu0 0
  %280 = vmatpush1.bf16.msra.mxu0 0
  %281 = vmatprep.subr.bf16.mxu0 0
  %282 = vmatpush1.bf16.msra.mxu0 0
  %283 = vmatprep.subr.bf16.mxu0 0
  %284 = vmatpush1.bf16.msra.mxu0 0
  %285 = vmatprep.subr.bf16.mxu0 0
  %286 = vmatpush1.bf16.msra.mxu0 0
  %287 = vmatprep.subr.bf16.mxu0 0
  %288 = vmatpush1.bf16.msra.mxu0 0
  %289 = vmatprep.subr.bf16.mxu0 0
  %290 = vmatpush1.bf16.msra.mxu0 0
  %291 = vmatprep.subr.bf16.mxu0 0
  %292 = vmatpush1.bf16.msra.mxu0 0
  %293 = vmatprep.mubr.bf16.mxu0 0
  %294 = vmatmul.mubr.bf16.gmra.mrb[0].mxu0 %v259
  %v295 = vpop.f32.mrb[0].mxu0
  %v296 = vadd.f32 %v231, %v295
  %v297 = vpop.f32.mrb[0].mxu0
  %v298 = vpop.f32.mrb[0].mxu0
  %v299 = vpop.f32.mrb[0].mxu0
  %300 = vdwg.mxu0
  %v301 = vmax.f32 %v296, 0.0
  %v302 = vld [vmem:[%s7] sm:$0x1]
  %v304 = vlaneseq
  %v305 = vshrl.u32 %v304, 7
  %v306 = vsub.s32 0, %v305
  %v307 = vrot.slane %v302, %v306
  %v309 = vmul.f32 %v301, %v307
  %v310 = vsel %vm59, %v309, 0.0
  %311 = vadd.xlane.f32.xlu0 %v310
  %v312 = vpop.xlane.xlu0 %311
  %v313 = vld [vmem:[#allocation2] sm:$0x1]
  %v315 = vlaneseq
  %v316 = vshrl.u32 %v315, 7
  %v317 = vsub.s32 0, %v316
  %v318 = vrot.slane %v313, %v317
  %v320 = vadd.f32 %v312, %v318
  %v321 = vxor.u32 %v320, 2147483648
  %v322 = vmul.f32 %v321, 1.442695
  %v323 = vpow.pop %v322
  %v324 = vadd.f32 %v323, 1.0
  %v325 = vrcp.pop %v324
  %v326 = vmul.f32 1.0, %v325
  %vm327 = vcmask 7168
  %328 = vst.msk [vmem:[%s9] sm:$0xff] %vm327, %v326
  // Predicated region
  $region38: #{tpu_custom_call.1} parent=0 // pred_check
    _
  $region39: #{tpu_custom_call.1} parent=0 // pred_check_branch
    %330 = sbr.rel (0) target = $region41
  $region40: #{tpu_custom_call.1} parent=0 // pred_region
    _
  $region41: #{tpu_custom_call.1} parent=0 // pred_fallthru
    _
  // Predicated region
  $region42: #{tpu_custom_call.1} parent=0 // pred_check
    _
  $region43: #{tpu_custom_call.1} parent=0 // pred_check_branch
    %332 = sbr.rel (0) target = $region45
  $region44: #{tpu_custom_call.1} parent=0 // pred_region
    _
  $region45: #{tpu_custom_call.1} parent=0 // pred_fallthru
    _

</llo_original>
